<compile_context>
chip_gen: v7x
topology: tpu7x:2x2x1
jax: 0.10.0
libtpu: 0.0.40
codegen_flags: <defaults>
</compile_context>

<pallas_src>
import math
import functools
import numpy as np
import jax
import jax.numpy as jnp
from jax.experimental import pallas as pl
from jax.experimental.pallas import tpu as pltpu


# ---------------------------------------------------------------------------
# Host-side parameter setup: stacked Gaussian-interpolated rotation matrices
# ---------------------------------------------------------------------------
# TODO(synk): RotationGroupTransformer / TransformTensorBatch / GaussianKernel
# source is not part of the module; their Gaussian-interpolated rotation on the
# (S+2, S+2) padded image is reimplemented here as precomputed linear maps
# (kernel_size=3, sigma=0.5, zero padding, weights normalized over the 3x3
# support) — the exact sampling convention of the original code may differ.
def build_rotation_matrices(basis_sz, nr_group_elems, kernel_size=3, sigma=0.5):
    """Returns (mt_stacked, n_valid):
       mt_stacked : (SS, Npad) float32, columns [g*SS:(g+1)*SS] = M_g^T,
                    zero-padded so Npad is a multiple of 128 (lane-dense out).
       n_valid    : G * SS (number of meaningful output columns)."""
    S = basis_sz
    P = S + 2                       # transformer image_size = (basis_sz+2, basis_sz+2)
    c = (P - 1) / 2.0               # rotation center of the padded image
    half = kernel_size // 2
    G = nr_group_elems
    SS = S * S

    # output pixel coordinates = inner SxS region of the padded image
    oy, ox = np.meshgrid(np.arange(1, S + 1), np.arange(1, S + 1), indexing="ij")
    oy = oy.reshape(-1).astype(np.float64)
    ox = ox.reshape(-1).astype(np.float64)

    M = np.zeros((G, SS, SS), dtype=np.float64)
    rows = np.arange(SS)
    for g in range(G):
        theta = 2.0 * math.pi * g / G          # group base_element = 2*pi/G
        ct, st = math.cos(theta), math.sin(theta)
        dy, dx = oy - c, ox - c
        # inverse-rotate output coords to source coords
        sy = c + ct * dy + st * dx
        sx = c - st * dy + ct * dx
        ry = np.round(sy).astype(np.int64)
        rx = np.round(sx).astype(np.int64)
        w_acc = np.zeros((SS, SS))
        w_sum = np.zeros((SS,))
        for dyk in range(-half, half + 1):
            for dxk in range(-half, half + 1):
                ny = ry + dyk
                nx = rx + dxk
                w = np.exp(-((ny - sy) ** 2 + (nx - sx) ** 2) / (2.0 * sigma ** 2))
                w_sum += w
                # padding ring (and anything outside) is zero -> no contribution
                valid = (ny >= 1) & (ny <= S) & (nx >= 1) & (nx <= S)
                iy = np.clip(ny - 1, 0, S - 1)
                ix = np.clip(nx - 1, 0, S - 1)
                col = iy * S + ix
                w_acc[rows, col] += np.where(valid, w, 0.0)
        M[g] = w_acc / w_sum[:, None]

    # stack M_g^T along columns:  out[:, g*SS:(g+1)*SS] = x_norm @ M_g^T
    Mt = np.transpose(M, (0, 2, 1))                               # (G, SS_in, SS_out)
    stacked = np.concatenate([Mt[g] for g in range(G)], axis=1)   # (SS, G*SS)
    n_valid = G * SS
    n_pad = ((n_valid + 127) // 128) * 128                        # lane-dense width
    if n_pad != n_valid:
        stacked = np.pad(stacked, ((0, 0), (0, n_pad - n_valid)))
    return jnp.asarray(stacked, dtype=jnp.float32), n_valid


# ---------------------------------------------------------------------------
# Pallas kernel: one fused normalization + stacked-group rotation matmul
# ---------------------------------------------------------------------------
def _basis_kernel(x_ref, gb_ref, mt_ref, o_ref):
    # x_ref:  (Mp, SS)    all stacked basis rows (group slice 0, flat spatial)
    # gb_ref: (Mp, 2)     column 0 = gamma, column 1 = beta (per row)
    # mt_ref: (SS, Npad)  stacked per-group rotation matrices M_g^T (padded)
    # o_ref:  (Mp, Npad)  lane-dense output: all G rotated copies side by side
    x = x_ref[...]
    ss = x.shape[-1]
    mean = jnp.mean(x, axis=-1, keepdims=True)
    centered = x - mean
    # torch.Tensor.std default is unbiased (ddof=1)
    var = jnp.sum(centered * centered, axis=-1, keepdims=True) / (ss - 1)
    std = jnp.sqrt(var)
    gamma = gb_ref[:, 0:1]
    beta = gb_ref[:, 1:2]
    # exact per-row reciprocal * multiply (keeps 1e-5 tolerance); padded rows
    # have gamma=0, so the 1/(0+1e-12)=1e12 they generate is neutralized.
    inv = gamma * pl.reciprocal(std + 1e-12, approx=False)
    xn = inv * centered + beta
    o_ref[...] = jnp.dot(xn, mt_ref[...], preferred_element_type=jnp.float32)


# ---------------------------------------------------------------------------
# Fused wrapper: batches any number of module instances into one pallas_call
# ---------------------------------------------------------------------------
@functools.partial(jax.jit, static_argnames=("n_valid",))
def gaussian_bases_forward(unnorm_stack, gamma_stack, beta_stack, mt_stacked,
                           *, n_valid):
    """unnorm_stack: tuple of (G, B_k, S, S) parameters (one per module/layer).
       gamma_stack / beta_stack: tuples of (B_k,) parameters.
       Returns a tuple of (G, B_k, S, S) normalized, group-transformed bases."""
    G, _, S, _ = unnorm_stack[0].shape
    SS = S * S

    # normalize_basis keeps only group slice [0] before repeating/rotating
    xs = [u[0].reshape(-1, SS).astype(jnp.float32) for u in unnorm_stack]
    gbs = [jnp.stack([g.astype(jnp.float32).reshape(-1),
                      b.astype(jnp.float32).reshape(-1)], axis=-1)
           for g, b in zip(gamma_stack, beta_stack)]
    sizes = [int(x.shape[0]) for x in xs]

    x = jnp.concatenate(xs, axis=0) if len(xs) > 1 else xs[0]       # (M, SS)
    gb = jnp.concatenate(gbs, axis=0) if len(gbs) > 1 else gbs[0]   # (M, 2)
    M = x.shape[0]

    # pad M to a multiple of 8 (sublane); padded rows have gamma=0, beta=0 so
    # they produce zeros and are sliced away below.
    m_pad = ((M + 7) // 8) * 8
    if m_pad != M:
        x = jnp.pad(x, ((0, m_pad - M), (0, 0)))
        gb = jnp.pad(gb, ((0, m_pad - M), (0, 0)))

    n_pad = mt_stacked.shape[1]

    cost = pl.CostEstimate(
        flops=2 * m_pad * SS * n_pad,
        transcendentals=m_pad,                       # sqrt + reciprocal per row
        bytes_accessed=4 * (m_pad * SS + SS * n_pad + m_pad * n_pad + m_pad * 2),
    )

    out = pl.pallas_call(
        _basis_kernel,
        out_shape=jax.ShapeDtypeStruct((m_pad, n_pad), jnp.float32),
        in_specs=[
            pl.BlockSpec(memory_space=pltpu.MemorySpace.VMEM),   # x
            pl.BlockSpec(memory_space=pltpu.MemorySpace.VMEM),   # gamma/beta
            pl.BlockSpec(memory_space=pltpu.MemorySpace.VMEM),   # stacked mt
        ],
        out_specs=pl.BlockSpec(memory_space=pltpu.MemorySpace.VMEM),
        cost_estimate=cost,
    )(x, gb, mt_stacked)

    # drop padding and rearrange to (G, M, SS) in plain (fused) XLA, then split
    # back per module instance.
    out = out[:M, :n_valid].reshape(M, G, SS)
    out = jnp.transpose(out, (1, 0, 2))              # (G, M, SS)
    results = []
    off = 0
    for bsz in sizes:
        results.append(out[:, off:off + bsz, :].reshape(G, bsz, S, S))
        off += bsz
    return tuple(results)


def gaussian_interpolated_basis_forward(unnormalized_basis, gamma, beta,
                                        mt_stacked, n_valid):
    """Single-module convenience wrapper -> (G, B, S, S)."""
    return gaussian_bases_forward((unnormalized_basis,), (gamma,), (beta,),
                                  mt_stacked, n_valid=n_valid)[0]


if __name__ == "__main__":
    # module hyperparameters (small, consistent with __init__)
    nr_basis = 8
    basis_sz = 6
    nr_group_elems = 8
    n_layers = 2          # demonstrate batching several module instances
    SS = basis_sz * basis_sz

    mt_stacked, n_valid = build_rotation_matrices(basis_sz, nr_group_elems)

    # normalize = (45.0, gamma_per_basis=True, gamma_learn=True,
    #              beta_per_basis=True, beta_learn=True)
    key = jax.random.PRNGKey(0)
    keys = jax.random.split(key, n_layers)
    unnorms, gammas, betas = [], [], []
    for li in range(n_layers):
        gammas.append(jnp.full((nr_basis,), 1.0 / 45.0, dtype=jnp.float32))
        betas.append(jnp.zeros((nr_basis,), dtype=jnp.float32))
        # deterministic parameter init (reset_parameters: normal(0, gamma[0]))
        unnorms.append((1.0 / 45.0) * jax.random.normal(
            keys[li], (nr_group_elems, nr_basis, basis_sz, basis_sz),
            dtype=jnp.float32))

    # one pallas_call for ALL module instances (overhead amortization)
    outs = gaussian_bases_forward(tuple(unnorms), tuple(gammas), tuple(betas),
                                  mt_stacked, n_valid=n_valid)
    outs = jax.block_until_ready(outs)

    # pure-JAX reference of the same math to sanity-check the kernel
    mt_groups = mt_stacked[:, :n_valid].reshape(SS, nr_group_elems, SS)
    mt_groups = jnp.transpose(mt_groups, (1, 0, 2))        # (G, SS_in, SS_out)
    ok = True
    for li in range(n_layers):
        out = outs[li]
        assert out.shape == (nr_group_elems, nr_basis, basis_sz, basis_sz)
        x = unnorms[li][0].reshape(nr_basis, SS)
        mean = jnp.mean(x, axis=-1, keepdims=True)
        std = jnp.std(x, axis=-1, keepdims=True, ddof=1)
        xn = gammas[li][:, None] * (x - mean) / (std + 1e-12) + betas[li][:, None]
        ref = jnp.einsum("bi,gij->gbj", xn, mt_groups).reshape(out.shape)
        ok = ok and bool(jnp.allclose(out, ref, atol=1e-5, rtol=1e-5))
    assert ok, "kernel mismatch vs reference"

    # single-module convenience path also works
    single = jax.block_until_ready(gaussian_interpolated_basis_forward(
        unnorms[0], gammas[0], betas[0], mt_stacked, n_valid))
    assert jnp.allclose(single, outs[0], atol=1e-6, rtol=1e-6)

    print("KERNEL_OK")
</pallas_src>

<mosaic_0001>
module attributes {stable_mosaic.version = 11 : i64} {
  func.func @_basis_kernel(%arg0: memref<16x36xf32, #tpu.memory_space<vmem>>, %arg1: memref<16x2xf32, #tpu.memory_space<vmem>>, %arg2: memref<36x384xf32, #tpu.memory_space<vmem>>, %arg3: memref<16x384xf32, #tpu.memory_space<vmem>>) attributes {dimension_semantics = [], scalar_prefetch = 0 : i64, scratch_operands = 0 : i64, tpu.core_type = #tpu.core_type<tc>} {
    %c0 = arith.constant 0 : index
    %c0_0 = arith.constant 0 : index
    %0 = vector.load %arg0[%c0, %c0_0] : memref<16x36xf32, #tpu.memory_space<vmem>>, vector<16x36xf32>
    %cst = arith.constant dense<0.000000e+00> : vector<16xf32>
    %1 = vector.multi_reduction <add>, %0, %cst [1] : vector<16x36xf32> to vector<16xf32>
    %2 = vector.shape_cast %1 : vector<16xf32> to vector<16x1xf32>
    %cst_1 = arith.constant 3.600000e+01 : f32
    %3 = vector.broadcast %cst_1 : f32 to vector<16x1xf32>
    %4 = arith.divf %2, %3 : vector<16x1xf32>
    %5 = vector.broadcast %4 : vector<16x1xf32> to vector<16x36xf32>
    %6 = arith.subf %0, %5 : vector<16x36xf32>
    %7 = arith.mulf %6, %6 : vector<16x36xf32>
    %cst_2 = arith.constant dense<0.000000e+00> : vector<16xf32>
    %8 = vector.multi_reduction <add>, %7, %cst_2 [1] : vector<16x36xf32> to vector<16xf32>
    %9 = vector.shape_cast %8 : vector<16xf32> to vector<16x1xf32>
    %cst_3 = arith.constant 3.500000e+01 : f32
    %10 = vector.broadcast %cst_3 : f32 to vector<16x1xf32>
    %11 = arith.divf %9, %10 : vector<16x1xf32>
    %12 = math.sqrt %11 : vector<16x1xf32>
    %c0_4 = arith.constant 0 : index
    %c0_5 = arith.constant 0 : index
    %13 = vector.load %arg1[%c0_4, %c0_5] : memref<16x2xf32, #tpu.memory_space<vmem>>, vector<16x1xf32>
    %c0_6 = arith.constant 0 : index
    %c1 = arith.constant 1 : index
    %14 = vector.load %arg1[%c0_6, %c1] : memref<16x2xf32, #tpu.memory_space<vmem>>, vector<16x1xf32>
    %cst_7 = arith.constant 9.99999996E-13 : f32
    %15 = vector.broadcast %cst_7 : f32 to vector<16x1xf32>
    %16 = arith.addf %12, %15 : vector<16x1xf32>
    %17 = tpu.reciprocal %16 : vector<16x1xf32> -> vector<16x1xf32>
    %18 = arith.mulf %13, %17 : vector<16x1xf32>
    %19 = vector.broadcast %18 : vector<16x1xf32> to vector<16x36xf32>
    %20 = arith.mulf %19, %6 : vector<16x36xf32>
    %21 = vector.broadcast %14 : vector<16x1xf32> to vector<16x36xf32>
    %22 = arith.addf %20, %21 : vector<16x36xf32>
    %c0_8 = arith.constant 0 : index
    %c0_9 = arith.constant 0 : index
    %23 = vector.load %arg2[%c0_8, %c0_9] : memref<36x384xf32, #tpu.memory_space<vmem>>, vector<36x384xf32>
    %cst_10 = arith.constant dense<0.000000e+00> : vector<16x384xf32>
    %24 = tpu.matmul %22, %23, %cst_10 {dimension_numbers = #tpu.dot_dimension_numbers<[1], [0], [0], [1], [0, 0, 1, 1], [], []>} : vector<16x36xf32>, vector<36x384xf32>, vector<16x384xf32> -> vector<16x384xf32>
    %c0_11 = arith.constant 0 : index
    %c0_12 = arith.constant 0 : index
    %25 = vector.load %arg3[%c0_11, %c0_12] : memref<16x384xf32, #tpu.memory_space<vmem>>, vector<16x384xf32>
    tpu.vector_store %arg3[%c0_11, %c0_12], %24 {strides = array<i32>} : memref<16x384xf32, #tpu.memory_space<vmem>>, vector<16x384xf32>,
    return
  }
}

</mosaic_0001>

<llo_original>
// kernel: gaussian_bases_forward.1
$region0: #{gaussian_bases_forward.1}
  #allocation0 [shape = 'u32[]', space=smem, size = 0x4, offset = 0x4, fixed_abs, tag = 'smem constant byte address 0x4 - core index']
  #allocation1 [shape = 'u32[144,128]{1,0:T(1,128)}', space=vmem, size = 0x12000, scoped, tag = 'internal scratch']
  %s0 = inlined_call_operand.vmem [shape: f32[16,36], index: 0, kind: input, shape index: {}]
  %s1 = inlined_call_operand.vmem [shape: f32[16,2], index: 1, kind: input, shape index: {}]
  %s2 = inlined_call_operand.vmem [shape: f32[36,384], index: 2, kind: input, shape index: {}]
  %s3 = inlined_call_operand.vmem [shape: f32[16,384], index: 3, kind: output, shape index: {}]
  %s4 = sld [smem:[#allocation0]]
  $region22: #{gaussian_bases_forward.1} parent=0
    _
  %s6 = ssub.s32 1, %s4
  %s7 = scalar_select 0, %s6, %s4
  // Predicated region
  $region2: #{gaussian_bases_forward.1} parent=0 // pred_check
    _
  $region3: #{gaussian_bases_forward.1} parent=0 // pred_check_branch
    %9 = sbr.rel (0) target = $region5
  $region4: #{gaussian_bases_forward.1} parent=0 // pred_region
    _
  $region5: #{gaussian_bases_forward.1} parent=0 // pred_fallthru
    _
  // Predicated region
  $region6: #{gaussian_bases_forward.1} parent=0 // pred_check
    _
  $region7: #{gaussian_bases_forward.1} parent=0 // pred_check_branch
    %11 = sbr.rel (0) target = $region9
  $region8: #{gaussian_bases_forward.1} parent=0 // pred_region
    _
  $region9: #{gaussian_bases_forward.1} parent=0 // pred_fallthru
    _
  // Predicated region
  $region10: #{gaussian_bases_forward.1} parent=0 // pred_check
    _
  $region11: #{gaussian_bases_forward.1} parent=0 // pred_check_branch
    %13 = sbr.rel (0) target = $region13
  $region12: #{gaussian_bases_forward.1} parent=0 // pred_region
    _
  $region13: #{gaussian_bases_forward.1} parent=0 // pred_fallthru
    _
  %v14 = vld [vmem:[%s0] sm:$0xff]
  %v15 = vld [vmem:[%s0 + $0x8] sm:$0xff]
  %vm16 = vcmask 293888
  %v17 = vsel %vm16, %v14, 0.0
  %18 = vadd.xlane.f32.xlu0 %v17
  %v19 = vpop.xlane.xlu0 %18
  %v20 = vsel %vm16, %v15, 0.0
  %21 = vadd.xlane.f32.xlu0 %v20
  %v22 = vpop.xlane.xlu0 %21
  %v23 = vrcp.pop 36.0
  %v24 = vmul.f32 %v19, %v23
  %v25 = vmul.f32 %v22, %v23
  %v26 = vsub.f32 %v14, %v24
  %v27 = vsub.f32 %v15, %v25
  %v28 = vmul.f32 %v26, %v26
  %v29 = vmul.f32 %v27, %v27
  %v30 = vsel %vm16, %v28, 0.0
  %31 = vadd.xlane.f32.xlu0 %v30
  %v32 = vpop.xlane.xlu0 %31
  %v33 = vsel %vm16, %v29, 0.0
  %34 = vadd.xlane.f32.xlu0 %v33
  %v35 = vpop.xlane.xlu0 %34
  %v36 = vrcp.pop 35.0
  %v37 = vmul.f32 %v32, %v36
  %v38 = vmul.f32 %v35, %v36
  %v39 = vrsqrt.pop %v37
  %v40 = vmul.f32 %v37, %v39
  %vm41 = vcmp.eq.f32.partialorder %v37, inf
  %v42 = vsel %vm41, %v37, %v40
  %vm43 = vcmp.eq.f32.partialorder %v37, 0.0
  %v44 = vand.u32 %v37, 2147483648
  %v45 = vsel %vm43, %v44, %v42
  %v46 = vrsqrt.pop %v38
  %v47 = vmul.f32 %v38, %v46
  %vm48 = vcmp.eq.f32.partialorder %v38, inf
  %v49 = vsel %vm48, %v38, %v47
  %vm50 = vcmp.eq.f32.partialorder %v38, 0.0
  %v51 = vand.u32 %v38, 2147483648
  %v52 = vsel %vm50, %v51, %v49
  %v53 = vld [vmem:[%s1] sm:$0xff]
  %v54 = vld [vmem:[%s1 + $0x8] sm:$0xff]
  %v55 = vadd.f32 %v45, 1e-12
  %v56 = vadd.f32 %v52, 1e-12
  %v57 = vrcp.pop %v55
  %v58 = vrcp.pop %v56
  %v59 = vmul.f32 %v53, %v57
  %v60 = vmul.f32 %v54, %v58
  %62 = vset.pattern.permute.xlu0 0
  %63 = vperm.xlu0 %62, %v59
  %v64 = vpop.permute.xlu0 %63
  %67 = vset.pattern.permute.xlu0 0
  %68 = vperm.xlu0 %67, %v60
  %v69 = vpop.permute.xlu0 %68
  %v71 = vmul.f32 %v64, %v26
  %v72 = vmul.f32 %v69, %v27
  %74 = vset.pattern.permute.xlu0 1
  %75 = vperm.xlu0 %74, %v53
  %v76 = vpop.permute.xlu0 %75
  %79 = vset.pattern.permute.xlu0 1
  %80 = vperm.xlu0 %79, %v54
  %v81 = vpop.permute.xlu0 %80
  %v83 = vadd.f32 %v71, %v76
  %v84 = vadd.f32 %v72, %v81
  %v85 = vld [vmem:[%s2] sm:$0xff]
  %v86 = vld [vmem:[%s2 + $0x8] sm:$0xff]
  %v87 = vld [vmem:[%s2 + $0x10] sm:$0xff]
  %v88 = vld [vmem:[%s2 + $0x18] sm:$0xff]
  %v89 = vld [vmem:[%s2 + $0x20] sm:$0xff]
  %v90 = vld [vmem:[%s2 + $0x28] sm:$0xff]
  %v91 = vld [vmem:[%s2 + $0x30] sm:$0xff]
  %v92 = vld [vmem:[%s2 + $0x38] sm:$0xff]
  %v93 = vld [vmem:[%s2 + $0x40] sm:$0xff]
  %v94 = vld [vmem:[%s2 + $0x48] sm:$0xff]
  %v95 = vld [vmem:[%s2 + $0x50] sm:$0xff]
  %v96 = vld [vmem:[%s2 + $0x58] sm:$0xff]
  %v97 = vld [vmem:[%s2 + $0x60] sm:$0xf]
  %v98 = vld [vmem:[%s2 + $0x68] sm:$0xf]
  %v99 = vld [vmem:[%s2 + $0x70] sm:$0xf]
  %v101 = vsel %vm16, %v83, 0
  %v104 = vsel %vm16, %v84, 0
  %vm106 = vcmask 1043456
  %v108 = vsel %vm106, %v97, 0
  %v111 = vsel %vm106, %v98, 0
  %v114 = vsel %vm106, %v99, 0
  %116 = vmatprep.subr.mxu0 %v86
  %117 = vmatpush1.msra.mxu0 %v85
  %118 = vmatprep.subr.mxu0 %v89
  %119 = vmatpush1.msra.mxu0 %v88
  %120 = vmatprep.subr.mxu0 %v92
  %121 = vmatpush1.msra.mxu0 %v91
  %122 = vmatprep.subr.mxu0 %v95
  %123 = vmatpush1.msra.mxu0 %v94
  %124 = vmatprep.subr.mxu0 %v111
  %125 = vmatpush1.msra.mxu0 %v108
  %126 = vmatprep.subr.mxu0 0.0
  %127 = vmatpush1.msra.mxu0 0.0
  %128 = vmatprep.subr.mxu0 0.0
  %129 = vmatpush1.msra.mxu0 0.0
  %130 = vmatprep.subr.mxu0 0.0
  %131 = vmatpush1.msra.mxu0 0.0
  %132 = vmatprep.subr.mxu0 0.0
  %133 = vmatpush1.msra.mxu0 0.0
  %134 = vmatprep.subr.mxu0 0.0
  %135 = vmatpush1.msra.mxu0 0.0
  %136 = vmatprep.subr.mxu0 0.0
  %137 = vmatpush1.msra.mxu0 0.0
  %138 = vmatprep.subr.mxu0 0.0
  %139 = vmatpush1.msra.mxu0 0.0
  %140 = vmatprep.subr.mxu0 0.0
  %141 = vmatpush1.msra.mxu0 0.0
  %142 = vmatprep.subr.mxu0 0.0
  %143 = vmatpush1.msra.mxu0 0.0
  %144 = vmatprep.subr.mxu0 0.0
  %145 = vmatpush1.msra.mxu0 0.0
  %146 = vmatprep.subr.mxu0 0.0
  %147 = vmatpush1.msra.mxu0 0.0
  %148 = vmatprep.subr.mxu0 0.0
  %149 = vmatpush1.msra.mxu0 0.0
  %150 = vmatprep.subr.mxu0 0.0
  %151 = vmatpush1.msra.mxu0 0.0
  %152 = vmatprep.subr.mxu0 0.0
  %153 = vmatpush1.msra.mxu0 0.0
  %154 = vmatprep.subr.mxu0 0.0
  %155 = vmatpush1.msra.mxu0 0.0
  %156 = vmatprep.subr.mxu0 0.0
  %157 = vmatpush1.msra.mxu0 0.0
  %158 = vmatprep.subr.mxu0 0.0
  %159 = vmatpush1.msra.mxu0 0.0
  %160 = vmatprep.subr.mxu0 0.0
  %161 = vmatpush1.msra.mxu0 0.0
  %162 = vmatprep.subr.mxu0 0.0
  %163 = vmatpush1.msra.mxu0 0.0
  %164 = vmatprep.subr.mxu0 0.0
  %165 = vmatpush1.msra.mxu0 0.0
  %166 = vmatprep.subr.mxu0 0.0
  %167 = vmatpush1.msra.mxu0 0.0
  %168 = vmatprep.subr.mxu0 0.0
  %169 = vmatpush1.msra.mxu0 0.0
  %170 = vmatprep.subr.mxu0 0.0
  %171 = vmatpush1.msra.mxu0 0.0
  %172 = vmatprep.subr.mxu0 0.0
  %173 = vmatpush1.msra.mxu0 0.0
  %174 = vmatprep.subr.mxu0 0.0
  %175 = vmatpush1.msra.mxu0 0.0
  %176 = vmatprep.subr.mxu0 0.0
  %177 = vmatpush1.msra.mxu0 0.0
  %178 = vmatprep.subr.mxu0 0.0
  %179 = vmatpush1.msra.mxu0 0.0
  %180 = vmatprep.mubr.f32.mxu0 0.0
  %181 = vmatmul.mubr.f32.gmra.mrb[0].mxu0 %v101
  %v182 = vpop.f32.mrb[0].mxu0
  %v183 = vadd.f32 0.0, %v182
  %v184 = vpop.f32.mrb[0].mxu0
  %v185 = vadd.f32 0.0, %v184
  %186 = vmatprep.mubr.f32.mxu0 0.0
  %187 = vmatmul.mubr.f32.gmra.mrb[0].mxu0 %v104
  %v188 = vpop.f32.mrb[0].mxu0
  %v189 = vadd.f32 0.0, %v188
  %v190 = vpop.f32.mrb[0].mxu0
  %v191 = vadd.f32 0.0, %v190
  %192 = vdwg.mxu0
  %193 = vmatprep.subr.mxu0 0.0
  %194 = vmatpush1.msra.mxu0 %v87
  %195 = vmatprep.subr.mxu0 0.0
  %196 = vmatpush1.msra.mxu0 %v90
  %197 = vmatprep.subr.mxu0 0.0
  %198 = vmatpush1.msra.mxu0 %v93
  %199 = vmatprep.subr.mxu0 0.0
  %200 = vmatpush1.msra.mxu0 %v96
  %201 = vmatprep.subr.mxu0 0.0
  %202 = vmatpush1.msra.mxu0 %v114
  %203 = vmatprep.subr.mxu0 0.0
  %204 = vmatpush1.msra.mxu0 0.0
  %205 = vmatprep.subr.mxu0 0.0
  %206 = vmatpush1.msra.mxu0 0.0
  %207 = vmatprep.subr.mxu0 0.0
  %208 = vmatpush1.msra.mxu0 0.0
  %209 = vmatprep.subr.mxu0 0.0
  %210 = vmatpush1.msra.mxu0 0.0
  %211 = vmatprep.subr.mxu0 0.0
  %212 = vmatpush1.msra.mxu0 0.0
  %213 = vmatprep.subr.mxu0 0.0
  %214 = vmatpush1.msra.mxu0 0.0
  %215 = vmatprep.subr.mxu0 0.0
  %216 = vmatpush1.msra.mxu0 0.0
  %217 = vmatprep.subr.mxu0 0.0
  %218 = vmatpush1.msra.mxu0 0.0
  %219 = vmatprep.subr.mxu0 0.0
  %220 = vmatpush1.msra.mxu0 0.0
  %221 = vmatprep.subr.mxu0 0.0
  %222 = vmatpush1.msra.mxu0 0.0
  %223 = vmatprep.subr.mxu0 0.0
  %224 = vmatpush1.msra.mxu0 0.0
  %225 = vmatprep.subr.mxu0 0.0
  %226 = vmatpush1.msra.mxu0 0.0
  %227 = vmatprep.subr.mxu0 0.0
  %228 = vmatpush1.msra.mxu0 0.0
  %229 = vmatprep.subr.mxu0 0.0
  %230 = vmatpush1.msra.mxu0 0.0
  %231 = vmatprep.subr.mxu0 0.0
  %232 = vmatpush1.msra.mxu0 0.0
  %233 = vmatprep.subr.mxu0 0.0
  %234 = vmatpush1.msra.mxu0 0.0
  %235 = vmatprep.subr.mxu0 0.0
  %236 = vmatpush1.msra.mxu0 0.0
  %237 = vmatprep.subr.mxu0 0.0
  %238 = vmatpush1.msra.mxu0 0.0
  %239 = vmatprep.subr.mxu0 0.0
  %240 = vmatpush1.msra.mxu0 0.0
  %241 = vmatprep.subr.mxu0 0.0
  %242 = vmatpush1.msra.mxu0 0.0
  %243 = vmatprep.subr.mxu0 0.0
  %244 = vmatpush1.msra.mxu0 0.0
  %245 = vmatprep.subr.mxu0 0.0
  %246 = vmatpush1.msra.mxu0 0.0
  %247 = vmatprep.subr.mxu0 0.0
  %248 = vmatpush1.msra.mxu0 0.0
  %249 = vmatprep.subr.mxu0 0.0
  %250 = vmatpush1.msra.mxu0 0.0
  %251 = vmatprep.subr.mxu0 0.0
  %252 = vmatpush1.msra.mxu0 0.0
  %253 = vmatprep.subr.mxu0 0.0
  %254 = vmatpush1.msra.mxu0 0.0
  %255 = vmatprep.subr.mxu0 0.0
  %256 = vmatpush1.msra.mxu0 0.0
  %257 = vmatprep.mubr.f32.mxu0 0.0
  %258 = vmatmul.mubr.f32.gmra.mrb[0].mxu0 %v101
  %v259 = vpop.f32.mrb[0].mxu0
  %v260 = vadd.f32 0.0, %v259
  %v261 = vpop.f32.mrb[0].mxu0
  %262 = vmatprep.mubr.f32.mxu0 0.0
  %263 = vmatmul.mubr.f32.gmra.mrb[0].mxu0 %v104
  %v264 = vpop.f32.mrb[0].mxu0
  %v265 = vadd.f32 0.0, %v264
  %v266 = vpop.f32.mrb[0].mxu0
  %267 = vdwg.mxu0
  %268 = vst [vmem:[%s3] sm:$0xff] %v183
  %269 = vst [vmem:[%s3 + $0x8] sm:$0xff] %v185
  %270 = vst [vmem:[%s3 + $0x10] sm:$0xff] %v260
  %271 = vst [vmem:[%s3 + $0x18] sm:$0xff] %v189
  %272 = vst [vmem:[%s3 + $0x20] sm:$0xff] %v191
  %273 = vst [vmem:[%s3 + $0x28] sm:$0xff] %v265
  // Predicated region
  $region14: #{gaussian_bases_forward.1} parent=0 // pred_check
    _
  $region15: #{gaussian_bases_forward.1} parent=0 // pred_check_branch
    %275 = sbr.rel (0) target = $region17
  $region16: #{gaussian_bases_forward.1} parent=0 // pred_region
    _
  $region17: #{gaussian_bases_forward.1} parent=0 // pred_fallthru
    _
  // Predicated region
  $region18: #{gaussian_bases_forward.1} parent=0 // pred_check
    _
  $region19: #{gaussian_bases_forward.1} parent=0 // pred_check_branch
    %277 = sbr.rel (0) target = $region21
  $region20: #{gaussian_bases_forward.1} parent=0 // pred_region
    _
  $region21: #{gaussian_bases_forward.1} parent=0 // pred_fallthru
    _

</llo_original>
